<compile_context>
chip_gen: v7x
topology: tpu7x:2x2x1
jax: 0.10.0
libtpu: 0.0.40
codegen_flags: <defaults>
</compile_context>

<pallas_src>
import numpy as np
import jax
import jax.numpy as jnp
from jax.experimental import pallas as pl
from jax.experimental.pallas import tpu as pltpu


def _frozen_adder_kernel(ga_ref, gb_ref, va_ref, vb_ref, a_ref, b_ref, o_ref):
    c = pl.program_id(2)
    a_blk = a_ref[...].astype(o_ref.dtype)
    b_blk = b_ref[...].astype(o_ref.dtype)
    # Exact zeros (not 0 * x) for channels this input does not feed: avoids
    # NaN/Inf leakage from the dummy gathered slab.  Pure load/select/add/store
    # so the kernel stays on the HBM roofline (the VPU work is filler).
    a_term = jnp.where(va_ref[c] != 0, a_blk, jnp.zeros_like(a_blk))
    b_term = jnp.where(vb_ref[c] != 0, b_blk, jnp.zeros_like(b_blk))
    o_ref[...] = a_term + b_term


def _build_gather_maps(out_channels, in_c, channels):
    """Inverse scatter map: for each output channel, which input channel feeds it."""
    inv = np.full((channels,), -1, dtype=np.int64)
    if out_channels is None:                      # scatter_* is None -> identity
        n = min(in_c, channels)
        inv[:n] = np.arange(n)
    else:
        oc = np.asarray(out_channels).reshape(-1).astype(np.int64)
        inv[oc] = np.arange(oc.shape[0])
    valid = (inv >= 0).astype(np.int32)
    # Channels fed by nothing reuse the most recent valid gather index: with
    # channel as the innermost grid axis, consecutive equal indices keep the
    # input block index unchanged and Pallas skips re-issuing the DMA (the
    # slab is masked to zero in-kernel anyway).
    gather = np.empty((channels,), dtype=np.int32)
    last = int(inv[int(valid.argmax())]) if valid.any() else 0
    for c in range(channels):
        if inv[c] >= 0:
            last = int(inv[c])
        gather[c] = last
    return gather, valid


def _vmem_capacity_bytes():
    """Per-core VMEM capacity; conservative (v7x) fallback if the query fails."""
    try:
        cap = int(pltpu.get_tpu_info().vmem_capacity_bytes)
        if cap > 0:
            return cap
    except Exception:
        pass
    return 64 << 20


def _choose_tiling(hw, min_itemsize, out_itemsize, budget):
    """View H*W as (rows, lane) and pick the sublane tile of `rows`.

    lane is a 128-multiple divisor of hw when one exists (dense, unmasked lane
    stores); row_tile is the largest divisor of rows whose PADDED
    (row_tile, lane) footprint fits `budget` while respecting (8,128)-tile
    alignment for the narrowest dtype in play.
    """
    lane = 128 if hw % 128 == 0 else hw
    rows = hw // lane
    min_sub = 8 * max(1, 4 // max(1, min_itemsize))   # 8 f32 / 16 bf16 / 32 int8
    lane_pad = -(-lane // 128) * 128

    def padded_bytes(t):
        return (-(-t // min_sub) * min_sub) * lane_pad * out_itemsize

    row_tile = rows
    if padded_bytes(rows) > budget:
        for t in range(rows - 1, 0, -1):
            if rows % t == 0 and t % min_sub == 0 and padded_bytes(t) <= budget:
                row_tile = t
                break
        # If no aligned divisor fits, keep the full slab; the caller raises
        # vmem_limit to cover it (fixes the old silently-capped fallback).
    return lane, rows, row_tile, padded_bytes(row_tile)


def frozen_adder(a, b, out_channels_a, out_channels_b, channels):
    out_dtype = jnp.result_type(a.dtype, b.dtype)

    # Empty-input branches of the PyTorch forward (rare, not perf-critical).
    a_empty = 0 in a.shape
    b_empty = 0 in b.shape
    if a_empty and b_empty:
        return jnp.zeros((0,), dtype=out_dtype)
    if a_empty or b_empty:
        # TODO(synk): the single-input branches use a plain JAX scatter rather
        # than the Pallas kernel (mirrors the PyTorch `out1 is None` paths).
        x, oc = (b, out_channels_b) if a_empty else (a, out_channels_a)
        if oc is None:
            return x
        n, _, h, w = x.shape
        idx = np.asarray(oc).reshape(-1)
        return jnp.zeros((n, channels, h, w), x.dtype).at[:, idx].set(x)

    N, Ca, H, W = a.shape
    Nb, Cb, Hb, Wb = b.shape
    assert (N, H, W) == (Nb, Hb, Wb)
    HW = H * W

    ga, va = _build_gather_maps(out_channels_a, Ca, channels)
    gb, vb = _build_gather_maps(out_channels_b, Cb, channels)
    ga, gb = jnp.asarray(ga), jnp.asarray(gb)
    va, vb = jnp.asarray(va), jnp.asarray(vb)

    out_itemsize = jnp.dtype(out_dtype).itemsize
    a_itemsize = jnp.dtype(a.dtype).itemsize
    b_itemsize = jnp.dtype(b.dtype).itemsize
    min_itemsize = min(a_itemsize, b_itemsize, out_itemsize)

    capacity = _vmem_capacity_bytes()
    # 3 arrays x 2 pipeline buffers live at once -> keep them within ~3/8 of
    # physical VMEM so tile choice is safe on v7x and roomy on v5e/v6e.
    budget = max(capacity // 16, 1 << 20)
    lane, rows, row_tile, padded_blk = _choose_tiling(
        HW, min_itemsize, out_itemsize, budget)
    n_sub = rows // row_tile
    # Always cover what the chosen tiles actually need (padded footprint).
    vmem_limit = int(min(max(6 * padded_blk + (2 << 20), 16 << 20), capacity))

    # Free (metadata-only) reshapes: NCHW stays NCHW, H*W split into (rows, lane).
    a_v = a.reshape(N, Ca, rows, lane)
    b_v = b.reshape(N, Cb, rows, lane)

    block = (1, 1, row_tile, lane)
    # index_maps receive (grid indices..., *scalar_prefetch_refs)
    a_spec = pl.BlockSpec(block, lambda n, s, c, ga, gb, va, vb: (n, ga[c], s, 0))
    b_spec = pl.BlockSpec(block, lambda n, s, c, ga, gb, va, vb: (n, gb[c], s, 0))
    o_spec = pl.BlockSpec(block, lambda n, s, c, ga, gb, va, vb: (n, c, s, 0))

    cost = pl.CostEstimate(
        flops=2 * channels * N * HW,
        transcendentals=0,
        bytes_accessed=int(N * HW * (Ca * a_itemsize + Cb * b_itemsize
                                     + channels * out_itemsize)),
    )

    out_v = pl.pallas_call(
        _frozen_adder_kernel,
        out_shape=jax.ShapeDtypeStruct((N, channels, rows, lane), out_dtype),
        grid_spec=pltpu.PrefetchScalarGridSpec(
            num_scalar_prefetch=4,
            grid=(N, n_sub, channels),   # channel innermost: gather-index reuse
            in_specs=[a_spec, b_spec],   # elides dummy DMAs for unfed channels
            out_specs=o_spec,
        ),
        compiler_params=pltpu.CompilerParams(
            dimension_semantics=("parallel", "parallel", "parallel"),
            vmem_limit_bytes=vmem_limit,
        ),
        cost_estimate=cost,
    )(ga, gb, va, vb, a_v, b_v)

    return out_v.reshape(N, channels, H, W)   # free reshape back to NCHW


def frozen_adder_ref(a, b, out_channels_a, out_channels_b, channels):
    """Pure-JAX reference replicating the PyTorch scatter-into-zeros + add."""
    N, Ca, H, W = a.shape
    _, Cb, _, _ = b.shape
    oa = np.arange(Ca) if out_channels_a is None else np.asarray(out_channels_a).reshape(-1)
    ob = np.arange(Cb) if out_channels_b is None else np.asarray(out_channels_b).reshape(-1)
    dt = jnp.result_type(a.dtype, b.dtype)
    out1 = jnp.zeros((N, channels, H, W), dt).at[:, oa].set(a.astype(dt))
    out2 = jnp.zeros((N, channels, H, W), dt).at[:, ob].set(b.astype(dt))
    return out1 + out2


if __name__ == "__main__":
    # Small synthetic config (mirrors FrozenAdder.__init__ arguments):
    #   channels = 8 total output channels
    #   a has 4 channels scattered to [0, 2, 5, 7]
    #   b has 3 channels scattered to [1, 2, 6]   (channel 2 overlaps -> summed;
    #   channels 3 and 4 receive nothing -> exact zeros)
    channels = 8
    out_channels_a = np.array([0, 2, 5, 7], dtype=np.int64)
    out_channels_b = np.array([1, 2, 6], dtype=np.int64)

    key = jax.random.PRNGKey(0)
    ka, kb = jax.random.split(key)
    a = jax.random.normal(ka, (2, 4, 16, 16), dtype=jnp.float32)
    b = jax.random.normal(kb, (2, 3, 16, 16), dtype=jnp.float32)
    # Inject a NaN: channels not fed by any input must still be exactly zero
    # (scatter-into-zeros semantics), not 0 * NaN.
    a = a.at[0, 0, 0, 0].set(jnp.nan)

    out = frozen_adder(a, b, out_channels_a, out_channels_b, channels)
    out = jax.block_until_ready(out)

    ref = frozen_adder_ref(a, b, out_channels_a, out_channels_b, channels)
    np.testing.assert_allclose(np.asarray(out), np.asarray(ref),
                               rtol=1e-6, atol=1e-6)
    assert np.all(np.asarray(out)[:, 3:5] == 0.0), "untouched channels must be exact zeros"

    print("KERNEL_OK")
</pallas_src>

<mosaic_0001>
module attributes {stable_mosaic.version = 11 : i64} {
  func.func @_frozen_adder_kernel(%arg0: i32, %arg1: i32, %arg2: i32, %arg3: memref<8xi32, #tpu.memory_space<smem>>, %arg4: memref<8xi32, #tpu.memory_space<smem>>, %arg5: memref<8xi32, #tpu.memory_space<smem>>, %arg6: memref<8xi32, #tpu.memory_space<smem>>, %arg7: memref<1x1x2x128xf32, #tpu.memory_space<vmem>>, %arg8: memref<1x1x2x128xf32, #tpu.memory_space<vmem>>, %arg9: memref<1x1x2x128xf32, #tpu.memory_space<vmem>>) attributes {dimension_semantics = [#tpu.dimension_semantics<parallel>, #tpu.dimension_semantics<parallel>, #tpu.dimension_semantics<parallel>], iteration_bounds = array<i64: 2, 1, 8>, scalar_prefetch = 4 : i64, scratch_operands = 0 : i64, tpu.core_type = #tpu.core_type<tc>, window_params = [{transform_indices = @transform_0, window_bounds = array<i64: 1, 1, 2, 128>}, {transform_indices = @transform_1, window_bounds = array<i64: 1, 1, 2, 128>}, {transform_indices = @transform_2, window_bounds = array<i64: 1, 1, 2, 128>}]} {
    %c0 = arith.constant 0 : index
    %c0_0 = arith.constant 0 : index
    %c0_1 = arith.constant 0 : index
    %c0_2 = arith.constant 0 : index
    %0 = vector.load %arg7[%c0, %c0_0, %c0_1, %c0_2] : memref<1x1x2x128xf32, #tpu.memory_space<vmem>>, vector<1x1x2x128xf32>
    %c0_3 = arith.constant 0 : index
    %c0_4 = arith.constant 0 : index
    %c0_5 = arith.constant 0 : index
    %c0_6 = arith.constant 0 : index
    %1 = vector.load %arg8[%c0_3, %c0_4, %c0_5, %c0_6] : memref<1x1x2x128xf32, #tpu.memory_space<vmem>>, vector<1x1x2x128xf32>
    %2 = arith.index_cast %arg2 : i32 to index
    %3 = memref.load %arg5[%2] : memref<8xi32, #tpu.memory_space<smem>>
    %c0_i32 = arith.constant 0 : i32
    %4 = arith.cmpi ne, %3, %c0_i32 : i32
    %cst = arith.constant 0.000000e+00 : f32
    %5 = vector.broadcast %cst : f32 to vector<1x1x2x128xf32>
    %6 = arith.select %4, %0, %5 : vector<1x1x2x128xf32>
    %7 = arith.index_cast %arg2 : i32 to index
    %8 = memref.load %arg6[%7] : memref<8xi32, #tpu.memory_space<smem>>
    %c0_i32_7 = arith.constant 0 : i32
    %9 = arith.cmpi ne, %8, %c0_i32_7 : i32
    %cst_8 = arith.constant 0.000000e+00 : f32
    %10 = vector.broadcast %cst_8 : f32 to vector<1x1x2x128xf32>
    %11 = arith.select %9, %1, %10 : vector<1x1x2x128xf32>
    %12 = arith.addf %6, %11 : vector<1x1x2x128xf32>
    %c0_9 = arith.constant 0 : index
    %c0_10 = arith.constant 0 : index
    %c0_11 = arith.constant 0 : index
    %c0_12 = arith.constant 0 : index
    %13 = vector.load %arg9[%c0_9, %c0_10, %c0_11, %c0_12] : memref<1x1x2x128xf32, #tpu.memory_space<vmem>>, vector<1x1x2x128xf32>
    tpu.vector_store %arg9[%c0_9, %c0_10, %c0_11, %c0_12], %12 {strides = array<i32>} : memref<1x1x2x128xf32, #tpu.memory_space<vmem>>, vector<1x1x2x128xf32>,
    return
  }
  func.func @transform_0(%arg0: i32, %arg1: i32, %arg2: i32, %arg3: memref<8xi32, #tpu.memory_space<smem>>, %arg4: memref<8xi32, #tpu.memory_space<smem>>, %arg5: memref<8xi32, #tpu.memory_space<smem>>, %arg6: memref<8xi32, #tpu.memory_space<smem>>) -> (i32, i32, i32, i32) {
    %0 = arith.index_cast %arg2 : i32 to index
    %1 = memref.load %arg3[%0] : memref<8xi32, #tpu.memory_space<smem>>
    %c0_i32 = arith.constant 0 : i32
    %c0_i32_0 = arith.constant 0 : i32
    return %arg0, %1, %arg1, %c0_i32 : i32, i32, i32, i32
  }
  func.func @transform_1(%arg0: i32, %arg1: i32, %arg2: i32, %arg3: memref<8xi32, #tpu.memory_space<smem>>, %arg4: memref<8xi32, #tpu.memory_space<smem>>, %arg5: memref<8xi32, #tpu.memory_space<smem>>, %arg6: memref<8xi32, #tpu.memory_space<smem>>) -> (i32, i32, i32, i32) {
    %0 = arith.index_cast %arg2 : i32 to index
    %1 = memref.load %arg4[%0] : memref<8xi32, #tpu.memory_space<smem>>
    %c0_i32 = arith.constant 0 : i32
    %c0_i32_0 = arith.constant 0 : i32
    return %arg0, %1, %arg1, %c0_i32 : i32, i32, i32, i32
  }
  func.func @transform_2(%arg0: i32, %arg1: i32, %arg2: i32, %arg3: memref<8xi32, #tpu.memory_space<smem>>, %arg4: memref<8xi32, #tpu.memory_space<smem>>, %arg5: memref<8xi32, #tpu.memory_space<smem>>, %arg6: memref<8xi32, #tpu.memory_space<smem>>) -> (i32, i32, i32, i32) {
    %c0_i32 = arith.constant 0 : i32
    %c0_i32_0 = arith.constant 0 : i32
    return %arg0, %arg2, %arg1, %c0_i32 : i32, i32, i32, i32
  }
}

</mosaic_0001>

<llo_original>
// kernel: tpu_custom_call.1
$region0: #{tpu_custom_call.1}
  #allocation0 [shape = 'u32[]', space=smem, size = 0x4, offset = 0x4, fixed_abs, tag = 'smem constant byte address 0x4 - core index']
  #allocation1 [shape = 'u32[144,128]{1,0:T(1,128)}', space=vmem, size = 0x12000, scoped, tag = 'internal scratch']
  #allocation2 [shape = 's32[1]{0}', space=sflag, size = 0x4, scoped, tag = 'scoped memory for tpu_custom_call.1']
  #allocation3 [shape = 'u8[512]{0}', space=smem, size = 0x200, scoped, tag = 'prefetched SMEM operand 0']
  #allocation4 [shape = 'u8[512]{0}', space=smem, size = 0x200, scoped, tag = 'prefetched SMEM operand 1']
  #allocation5 [shape = 'u8[512]{0}', space=smem, size = 0x200, scoped, tag = 'prefetched SMEM operand 2']
  #allocation6 [shape = 'u8[512]{0}', space=smem, size = 0x200, scoped, tag = 'prefetched SMEM operand 3']
  %s0 = inlined_call_operand.hbm [shape: s32[8], index: 0, kind: input, shape index: {}]
  %s1 = inlined_call_operand.vmem [shape: s32[8], index: 1, kind: input, shape index: {}]
  %s2 = inlined_call_operand.vmem [shape: s32[8], index: 2, kind: input, shape index: {}]
  %s3 = inlined_call_operand.vmem [shape: s32[8], index: 3, kind: input, shape index: {}]
  %s4 = inlined_call_operand.hbm [shape: f32[2,4,2,128], index: 4, kind: input, shape index: {}]
  %s5 = inlined_call_operand.vmem [shape: f32[2,3,2,128], index: 5, kind: input, shape index: {}]
  %s6 = inlined_call_operand.hbm [shape: f32[2,8,2,128], index: 6, kind: output, shape index: {}]
  %s7 = sld [smem:[#allocation0]]
  $region45: #{tpu_custom_call.1} parent=0
    _
  %s9 = ssub.s32 1, %s7
  %s10 = scalar_select 0, %s9, %s7
  %12 = dma.hbm_to_smem %s0, 16, [#allocation3], [#allocation2]
  %s13 = sshll.u32 %s1, 4
  %s14 = int_to_ptr.vmem [resolvable:$true] %s13
  %16 = dma.vmem_to_smem %s14, 16, [#allocation4], [#allocation2]
  %s17 = sshll.u32 %s2, 4
  %s18 = int_to_ptr.vmem [resolvable:$true] %s17
  %20 = dma.vmem_to_smem %s18, 16, [#allocation5], [#allocation2]
  %s21 = sshll.u32 %s3, 4
  %s22 = int_to_ptr.vmem [resolvable:$true] %s21
  %24 = dma.vmem_to_smem %s22, 16, [#allocation6], [#allocation2]
  %25 = dma.done [#allocation2], 64
  %26 = sfence
  $region1: #{tpu_custom_call.1} parent=0
    #allocation7 [shape = 'u8[2048]{0}', space=vmem, size = 0x800, scoped, tag = 'input window, operand 4']
    #allocation8 [shape = 's32[2]{0}', space=sflag, size = 0x8, scoped, tag = 'scoped memory for tpu_custom_call.1']
    #allocation9 [shape = 's32[2]{0}', space=sflag, size = 0x8, scoped, tag = 'scoped memory for tpu_custom_call.1']
    #allocation10 [shape = 'u8[2048]{0}', space=vmem, size = 0x800, scoped, tag = 'output window, operand 0']
    %27 = vsyncpa [#allocation8], 0
    %s28 = scalar_lea.sflag [#allocation8], 1
    %29 = vsyncpa %s28, 0
    %30 = vsyncpa [#allocation9], 0
    %s31 = scalar_lea.sflag [#allocation9], 1
    %32 = vsyncpa %s31, 0
    loop: start=0, step=1, limit=18
    $region2: #{tpu_custom_call.1} parent=1 // loop_pre_header
      _
    $region3: #{tpu_custom_call.1} parent=1 // loop_header
      %s34 = sphi 0, %s38
      %p35 = scmp.ge.s32.totalorder %s34, 18
      %s41 = sphi 0, %s60
      %s42 = sphi 0, %s56
      %s43 = sphi 0, %s52
      %s44 = sphi 0, %s41
      %s45 = sphi 0, %s42
      %s46 = sphi 0, %s43
      %s47 = sphi 0, %s44
      %s48 = sphi 0, %s45
      %s49 = sphi 0, %s46
      %s69 = sphi 0, %s71
      %s72 = sphi 0, %s69
      %s73 = sphi 0, %s72
      %s89 = sphi 0, %s73
      %s101 = sphi 0, %s103
      %s104 = sphi 0, %s101
      %s105 = sphi 0, %s104
      %s121 = sphi 0, %s105
      %s131 = sphi 0, %s133
      %s134 = sphi 0, %s131
      %s135 = sphi 0, %s134
      %s151 = sphi 0, %s135
    $region4: #{tpu_custom_call.1} parent=1 // loop_header_branch
      %37 = sbr.rel (%p35) target = $region8
    $region5: #{tpu_custom_call.1} parent=1 // loop_body
      %s39 = ssub.s32 %s34, 1
      %s40 = ssub.s32 %s34, 2
      %s50 = sadd.s32 1, %s43
      %p51 = scmp.ge.s32.totalorder %s50, 8
      %s52 = scalar_select %p51, 0, %s50
      %s53 = sadd.s32 1, %s42
      %s54 = scalar_select %p51, %s53, %s42
      %p55 = scmp.ge.s32.totalorder %s54, 1
      %s56 = scalar_select %p55, 0, %s54
      %s57 = sadd.s32 1, %s41
      %s58 = scalar_select %p55, %s57, %s41
      %p59 = scmp.ge.s32.totalorder %s58, 2
      %s60 = scalar_select %p59, 0, %s58
      %s61 = sld [smem:[#allocation3 + %s43]]
      %s62 = sld [smem:[#allocation3 + %s52]]
      %s63 = ssub.s32 %s41, %s60
      %s64 = ssub.s32 %s61, %s62
      %s65 = sor.u32 %s63, %s64
      %s66 = ssub.s32 %s42, %s56
      %s67 = sor.u32 %s65, %s66
      %p68 = scmp.eq.s32.totalorder %s67, 0
      %s70 = sadd.s32 %s69, 1
      %s71 = scalar_select %p68, %s69, %s70
      %p74 = pneg %p68
      %p75 = scmp.eq.s32.totalorder %s34, 15
      %p76 = por %p74, %p75
      %p77 = scmp.ne.s32.totalorder %s69, %s72
      %p78 = scmp.eq.s32.totalorder %s34, 0
      %p79 = por %p77, %p78
      %p80 = scmp.ne.s32.totalorder %s69, %s72
      %p81 = scmp.eq.s32.totalorder %s39, 15
      %p82 = por %p80, %p81
      %p83 = scmp.ne.s32.totalorder %s72, %s73
      %p84 = scmp.eq.s32.totalorder %s39, 0
      %p85 = por %p83, %p84
      %p86 = scmp.ne.s32.totalorder %s72, %s73
      %p87 = scmp.eq.s32.totalorder %s40, 15
      %p88 = por %p86, %p87
      %p90 = scmp.ne.s32.totalorder %s73, %s89
      %p91 = scmp.eq.s32.totalorder %s40, 0
      %p92 = por %p90, %p91
      %s93 = sld [smem:[#allocation4 + %s43]]
      %s94 = sld [smem:[#allocation4 + %s52]]
      %s95 = ssub.s32 %s41, %s60
      %s96 = ssub.s32 %s93, %s94
      %s97 = sor.u32 %s95, %s96
      %s98 = ssub.s32 %s42, %s56
      %s99 = sor.u32 %s97, %s98
      %p100 = scmp.eq.s32.totalorder %s99, 0
      %s102 = sadd.s32 %s101, 1
      %s103 = scalar_select %p100, %s101, %s102
      %p106 = pneg %p100
      %p107 = scmp.eq.s32.totalorder %s34, 15
      %p108 = por %p106, %p107
      %p109 = scmp.ne.s32.totalorder %s101, %s104
      %p110 = scmp.eq.s32.totalorder %s34, 0
      %p111 = por %p109, %p110
      %p112 = scmp.ne.s32.totalorder %s101, %s104
      %p113 = scmp.eq.s32.totalorder %s39, 15
      %p114 = por %p112, %p113
      %p115 = scmp.ne.s32.totalorder %s104, %s105
      %p116 = scmp.eq.s32.totalorder %s39, 0
      %p117 = por %p115, %p116
      %p118 = scmp.ne.s32.totalorder %s104, %s105
      %p119 = scmp.eq.s32.totalorder %s40, 15
      %p120 = por %p118, %p119
      %p122 = scmp.ne.s32.totalorder %s105, %s121
      %p123 = scmp.eq.s32.totalorder %s40, 0
      %p124 = por %p122, %p123
      %s125 = ssub.s32 %s41, %s60
      %s126 = ssub.s32 %s43, %s52
      %s127 = sor.u32 %s125, %s126
      %s128 = ssub.s32 %s42, %s56
      %s129 = sor.u32 %s127, %s128
      %p130 = scmp.eq.s32.totalorder %s129, 0
      %s132 = sadd.s32 %s131, 1
      %s133 = scalar_select %p130, %s131, %s132
      %p136 = pneg %p130
      %p137 = scmp.eq.s32.totalorder %s34, 15
      %p138 = por %p136, %p137
      %p139 = scmp.ne.s32.totalorder %s131, %s134
      %p140 = scmp.eq.s32.totalorder %s34, 0
      %p141 = por %p139, %p140
      %p142 = scmp.ne.s32.totalorder %s131, %s134
      %p143 = scmp.eq.s32.totalorder %s39, 15
      %p144 = por %p142, %p143
      %p145 = scmp.ne.s32.totalorder %s134, %s135
      %p146 = scmp.eq.s32.totalorder %s39, 0
      %p147 = por %p145, %p146
      %p148 = scmp.ne.s32.totalorder %s134, %s135
      %p149 = scmp.eq.s32.totalorder %s40, 15
      %p150 = por %p148, %p149
      %p152 = scmp.ne.s32.totalorder %s135, %s151
      %p153 = scmp.eq.s32.totalorder %s40, 0
      %p154 = por %p152, %p153
      %p155 = scmp.le.s32.totalorder 1, %s34
      %p156 = scmp.lt.s32.totalorder %s34, 17
      %p157 = pnand %p155, %p156
      %p158 = pneg %p157
      // Predicated region
      $region9: #{tpu_custom_call.1} parent=5 // pred_check
        _
      $region10: #{tpu_custom_call.1} parent=5 // pred_check_branch
        %160 = sbr.rel (%p157) target = $region12
      $region11: #{tpu_custom_call.1} parent=5 // pred_region
        %s161 = ssub.s32 %s34, 1
      $region12: #{tpu_custom_call.1} parent=5 // pred_fallthru
        _
      %p162 = scmp.lt.s32.totalorder %s34, 16
      // Predicated region
      $region13: #{tpu_custom_call.1} parent=5 // pred_check
        %p163 = pneg %p162
      $region14: #{tpu_custom_call.1} parent=5 // pred_check_branch
        %165 = sbr.rel (%p163) target = $region16
      $region15: #{tpu_custom_call.1} parent=5 // pred_region
        // Predicated region
        $region17: #{tpu_custom_call.1} parent=15 // pred_check
          %p166 = pneg %p79
        $region18: #{tpu_custom_call.1} parent=15 // pred_check_branch
          %168 = sbr.rel (%p166) target = $region20
        $region19: #{tpu_custom_call.1} parent=15 // pred_region
          %s169 = sand.u32 %s69, 1
          %s170 = scalar_lea.sflag [#allocation8], %s169
          %s171 = sand.u32 %s69, 1
          %s172 = smul.addr %s171, 2
          %s173 = scalar_lea.vmem [#allocation7], %s172
          %s174 = sld [smem:[#allocation3 + %s43]]
          %s176 = ssub.s32 32, 32
          %177 = vsyncadd %s170, %s176
          %s178 = sadd.s32 %s42, %s174
          %s179 = smul.addr %s41, 4
          %s180 = sadd.s32 %s178, %s179
          %s181 = smul.addr %s180, 32
          %s182 = scalar_lea.hbm %s4, %s181
          %s184 = sshll.u32 %s173, 4
          %s185 = int_to_ptr.vmem [resolvable:$true] %s184
          %187 = dma.hbm_to_vmem [thread:$0]  %s182, 32, %s185, %s170
        $region20: #{tpu_custom_call.1} parent=15 // pred_fallthru
          _
        // Predicated region
        $region21: #{tpu_custom_call.1} parent=15 // pred_check
          %p188 = pneg %p111
        $region22: #{tpu_custom_call.1} parent=15 // pred_check_branch
          %190 = sbr.rel (%p188) target = $region24
        $region23: #{tpu_custom_call.1} parent=15 // pred_region
          %s191 = sld [smem:[#allocation4 + %s43]]
          %p192 = scmp.lt.s32.totalorder %s41, 1
          %s193 = scalar_select %p192, %s41, 1
          %p194 = scmp.lt.s32.totalorder %s191, 2
          %s195 = scalar_select %p194, %s191, 2
          %p196 = scmp.lt.s32.totalorder %s42, 0
          %s197 = scalar_select %p196, %s42, 0
          %s198 = sadd.s32 %s197, %s195
          %s199 = smul.addr %s193, 3
          %s200 = sadd.s32 %s198, %s199
          %s201 = smul.addr %s200, 2
          %s202 = scalar_lea.vmem %s5, %s201
          %s203 = sld [smem:[#allocation4 + %s43]]
        $region24: #{tpu_custom_call.1} parent=15 // pred_fallthru
          _
      $region16: #{tpu_custom_call.1} parent=5 // pred_fallthru
        _
      %p204 = scmp.le.s32.totalorder 1, %s34
      %p205 = scmp.lt.s32.totalorder %s34, 17
      %p206 = pnand %p204, %p205
      %p207 = pneg %p206
      // Predicated region
      $region25: #{tpu_custom_call.1} parent=5 // pred_check
        _
      $region26: #{tpu_custom_call.1} parent=5 // pred_check_branch
        %209 = sbr.rel (%p206) target = $region28
      $region27: #{tpu_custom_call.1} parent=5 // pred_region
        %s210 = ssub.s32 %s34, 1
        %s211 = sand.u32 %s72, 1
        %s212 = scalar_lea.sflag [#allocation8], %s211
        %s213 = sand.u32 %s72, 1
        %s214 = smul.addr %s213, 2
        %s215 = scalar_lea.vmem [#allocation7], %s214
        // Predicated region
        $region29: #{tpu_custom_call.1} parent=27 // pred_check
          %p216 = pneg %p85
        $region30: #{tpu_custom_call.1} parent=27 // pred_check_branch
          %218 = sbr.rel (%p216) target = $region32
        $region31: #{tpu_custom_call.1} parent=27 // pred_region
          %219 = dma.done %s212, 32
        $region32: #{tpu_custom_call.1} parent=27 // pred_fallthru
          _
        %s220 = sand.u32 %s72, 1
        %s221 = scalar_lea.sflag [#allocation8], %s220
        %s222 = sand.u32 %s72, 1
        %s223 = smul.addr %s222, 2
        %s224 = scalar_lea.vmem [#allocation7], %s223
        %p225 = pneg %p85
        %p226 = pneg %p82
        %s227 = sld [smem:[#allocation4 + %s46]]
        %p228 = scmp.lt.s32.totalorder %s44, 1
        %s229 = scalar_select %p228, %s44, 1
        %p230 = scmp.lt.s32.totalorder %s227, 2
        %s231 = scalar_select %p230, %s227, 2
        %p232 = scmp.lt.s32.totalorder %s45, 0
        %s233 = scalar_select %p232, %s45, 0
        %s234 = sadd.s32 %s233, %s231
        %s235 = smul.addr %s229, 3
        %s236 = sadd.s32 %s234, %s235
        %s237 = smul.addr %s236, 2
        %s238 = scalar_lea.vmem %s5, %s237
        %p239 = pneg %p117
        %p240 = pneg %p114
        %p241 = pneg %p147
        %p242 = pneg %p144
        %s243 = sand.u32 %s134, 1
        %s244 = scalar_lea.sflag [#allocation9], %s243
        %s245 = sand.u32 %s134, 1
        %s246 = smul.addr %s245, 2
        %s247 = scalar_lea.vmem [#allocation10], %s246
        %s248 = sld [smem:[#allocation3 + %s46]]
        %s249 = sld [smem:[#allocation4 + %s46]]
        %p250 = scmp.lt.s32.totalorder %s44, 1
        %s251 = scalar_select %p250, %s44, 1
        %p252 = scmp.lt.s32.totalorder %s249, 2
        %s253 = scalar_select %p252, %s249, 2
        %p254 = scmp.lt.s32.totalorder %s45, 0
        %s255 = scalar_select %p254, %s45, 0
        %s256 = sadd.s32 %s255, %s253
        %s257 = smul.addr %s251, 3
        %s258 = sadd.s32 %s256, %s257
        %s259 = smul.addr %s258, 2
        %s260 = scalar_lea.vmem %s5, %s259
        %s261 = sld [smem:[#allocation4 + %s46]]
        %v262 = vld [vmem:[%s215] sm:$0x3]
        %v263 = vld [vmem:[%s260] sm:$0x3]
        %s264 = sld [smem:[#allocation5 + %s46]]
        %p265 = scmp.ne.s32.totalorder %s264, 0
        %s266 = scalar_select %p265, 1, 0
        %v267 = vstv %s266
        %vm268 = vcmp.eq.s32.totalorder %v267, 1
        %v269 = vsel %vm268, %v262, 0.0
        %s270 = sld [smem:[#allocation6 + %s46]]
        %p271 = scmp.ne.s32.totalorder %s270, 0
        %s272 = scalar_select %p271, 1, 0
        %v273 = vstv %s272
        %vm274 = vcmp.eq.s32.totalorder %v273, 1
        %v275 = vsel %vm274, %v263, 0.0
        %v276 = vadd.f32 %v269, %v275
        %277 = vst [vmem:[%s247] sm:$0x3] %v276
        %s278 = sand.u32 %s134, 1
        %s279 = scalar_lea.sflag [#allocation9], %s278
        %s280 = sand.u32 %s134, 1
        %s281 = smul.addr %s280, 2
        %s282 = scalar_lea.vmem [#allocation10], %s281
        // Predicated region
        $region33: #{tpu_custom_call.1} parent=27 // pred_check
          %p283 = pneg %p144
        $region34: #{tpu_custom_call.1} parent=27 // pred_check_branch
          %285 = sbr.rel (%p283) target = $region36
        $region35: #{tpu_custom_call.1} parent=27 // pred_region
          %s287 = ssub.s32 32, 32
          %288 = vsyncadd %s279, %s287
          %s289 = sadd.s32 %s45, %s46
          %s290 = smul.addr %s44, 8
          %s291 = sadd.s32 %s289, %s290
          %s292 = smul.addr %s291, 32
          %s293 = scalar_lea.hbm %s6, %s292
          %s295 = sshll.u32 %s282, 4
          %s296 = int_to_ptr.vmem [resolvable:$true] %s295
          %298 = dma.vmem_to_hbm [thread:$0]  %s296, 32, %s293, %s279
        $region36: #{tpu_custom_call.1} parent=27 // pred_fallthru
          _
      $region28: #{tpu_custom_call.1} parent=5 // pred_fallthru
        _
      %p299 = scmp.le.s32.totalorder 2, %s34
      // Predicated region
      $region37: #{tpu_custom_call.1} parent=5 // pred_check
        %p300 = pneg %p299
      $region38: #{tpu_custom_call.1} parent=5 // pred_check_branch
        %302 = sbr.rel (%p300) target = $region40
      $region39: #{tpu_custom_call.1} parent=5 // pred_region
        %s303 = ssub.s32 %s34, 2
        // Predicated region
        $region41: #{tpu_custom_call.1} parent=39 // pred_check
          %p304 = pneg %p150
        $region42: #{tpu_custom_call.1} parent=39 // pred_check_branch
          %306 = sbr.rel (%p304) target = $region44
        $region43: #{tpu_custom_call.1} parent=39 // pred_region
          %s307 = sand.u32 %s135, 1
          %s308 = scalar_lea.sflag [#allocation9], %s307
          %s309 = sand.u32 %s135, 1
          %s310 = smul.addr %s309, 2
          %s311 = scalar_lea.vmem [#allocation10], %s310
          %312 = dma.done %s308, 32
        $region44: #{tpu_custom_call.1} parent=39 // pred_fallthru
          _
      $region40: #{tpu_custom_call.1} parent=5 // pred_fallthru
        _
    $region6: #{tpu_custom_call.1} parent=1 // loop_footer
      %s38 = sadd.s32 1, %s34
    $region7: #{tpu_custom_call.1} parent=1 // loop_footer_branch
      %33 = sbr.rel target = $region3
    $region8: #{tpu_custom_call.1} parent=1 // loop_exit
      _
    %313 = vsyncpa [#allocation8], 1
    %s314 = scalar_lea.sflag [#allocation8], 1
    %315 = vsyncpa %s314, 1
    %316 = vsyncpa [#allocation9], 1
    %s317 = scalar_lea.sflag [#allocation9], 1
    %318 = vsyncpa %s317, 1

</llo_original>
